<compile_context>
chip_gen: v7x
topology: tpu7x:2x2x1
jax: 0.10.0
libtpu: 0.0.40
codegen_flags: <defaults>
</compile_context>

<pallas_src>
import jax
import jax.numpy as jnp
from jax.experimental import pallas as pl
from jax.experimental.pallas import tpu as pltpu


def mlp_kernel(x_ref, w1_ref, b1_ref, w2_ref, b2_ref, w3_ref, b3_ref, o_ref):
    x = x_ref[...]            # (TB, IN)
    b1 = b1_ref[...]          # (H1, 1)  broadcasts along lanes
    b2 = b2_ref[...]          # (H2, 1)
    b3 = b3_ref[...]          # (1, 1)

    # fc1 ("NT" dot): contract both operands on IN -> (H1, TB), batch on lanes.
    h1 = jax.lax.dot_general(
        w1_ref[...], x, dimension_numbers=(((1,), (1,)), ((), ())),
        preferred_element_type=jnp.float32)
    h1 = jnp.maximum(h1 + b1, 0.0)                      # f32 epilogue

    # fc2 (NN): (H2,H1) @ (H1,TB) -> (H2,TB).  Cast to the weight dtype so the
    # bf16 path feeds bf16 to the MXU; accumulation stays f32.
    h2 = jnp.dot(w2_ref[...], h1.astype(w2_ref.dtype),
                 preferred_element_type=jnp.float32)
    h2 = jnp.maximum(h2 + b2, 0.0)

    # fc3 (NN): (1,H2) @ (H2,TB) -> (1,TB); lane-dense output store.
    logits = jnp.dot(w3_ref[...], h2.astype(w3_ref.dtype),
                     preferred_element_type=jnp.float32)
    o_ref[...] = jax.nn.sigmoid(logits + b3)


def _round_up(x, m):
    return (x + m - 1) // m * m


def _cdiv(a, b):
    return (a + b - 1) // b


_LANES = 128
_VMEM_TILE_BUDGET = 40 << 20   # working-set budget per tile (fits v7x 64 MiB VMEM)
_VMEM_LIMIT = 56 << 20         # raise past v5e/v6e/v7x scoped defaults, <= physical


def _pick_batch_tile(B, block_batch, x_itemsize, IN, H1, H2):
    # Requested tile, multiple of 128, never bigger than the (rounded-up) batch.
    tb = min(_round_up(block_batch, _LANES), _round_up(B, _LANES))
    # Keep >= 4 tiles for large batches so v7x's two TensorCores both get work
    # (and each still has >=2 tiles to pipeline).
    tb = min(tb, max(_round_up(_cdiv(B, 4), _LANES), _LANES))
    # Explicit VMEM budget. Per batch row (worst case): x double-buffered with its
    # minor dim padded to a full 128-lane tile, f32 (H1,TB)/(H2,TB) intermediates,
    # double-buffered (1,TB) output, plus margin for a transposed x copy.
    per_row = (2 * _round_up(IN, _LANES) * x_itemsize
               + (H1 + H2 + 2 * IN + 2) * 4)
    tb_cap = max((_VMEM_TILE_BUDGET // per_row) // _LANES * _LANES, _LANES)
    return max(min(tb, tb_cap), _LANES)


def mlp_forward(x, params, *, block_batch=32768, mxu_in_bf16=True):
    """sigmoid(relu(relu(x@w1+b1)@w2+b2)@w3+b3), tiled over the batch dimension."""
    w1, b1, w2, b2, w3, b3 = params          # w*: (in, out), b*: (1, out)
    B, IN = x.shape
    H1 = w1.shape[1]
    H2 = w2.shape[1]

    # bf16 MXU inputs (x is the dominant HBM stream); f32 accumulation/epilogue.
    if mxu_in_bf16:
        x = x.astype(jnp.bfloat16)
        w1 = w1.astype(jnp.bfloat16)
        w2 = w2.astype(jnp.bfloat16)

    # (out, in) weight rows + column biases -> batch-on-lanes dots in the kernel.
    # These are tiny arrays; the transposes/reshapes are free layout plumbing.
    w1t = w1.T                                     # (H1, IN)
    w2t = w2.T                                     # (H2, H1)
    w3r = w3.reshape(1, H2).astype(jnp.float32)    # fc3 + epilogue stay f32
    b1c = b1.reshape(H1, 1)
    b2c = b2.reshape(H2, 1)
    b3c = b3.reshape(1, 1)

    TB = _pick_batch_tile(B, block_batch, x.dtype.itemsize, IN, H1, H2)
    grid = (_cdiv(B, TB),)     # no jnp.pad copy: ragged last tile is masked by Pallas

    flops = 2 * B * (IN * H1 + H1 * H2 + H2)
    bytes_accessed = int(
        x.size * x.dtype.itemsize + B * 4
        + w1t.size * w1t.dtype.itemsize + w2t.size * w2t.dtype.itemsize
        + (b1c.size + b2c.size + w3r.size + 1) * 4)

    out = pl.pallas_call(
        mlp_kernel,
        out_shape=jax.ShapeDtypeStruct((1, B), jnp.float32),
        grid_spec=pltpu.PrefetchScalarGridSpec(
            num_scalar_prefetch=0,
            grid=grid,
            in_specs=[
                # x tiles stream through VMEM (Pallas double-buffers them).
                pl.BlockSpec((TB, IN), lambda i: (i, 0)),
                # Weights/biases: constant index_map -> VMEM-resident across the grid.
                pl.BlockSpec((H1, IN), lambda i: (0, 0)),
                pl.BlockSpec((H1, 1), lambda i: (0, 0)),
                pl.BlockSpec((H2, H1), lambda i: (0, 0)),
                pl.BlockSpec((H2, 1), lambda i: (0, 0)),
                pl.BlockSpec((1, H2), lambda i: (0, 0)),
                pl.BlockSpec((1, 1), lambda i: (0, 0)),
            ],
            # Lane-dense output: each grid step writes a (1, TB) batch-on-lanes row.
            out_specs=pl.BlockSpec((1, TB), lambda i: (0, i)),
        ),
        compiler_params=pltpu.CompilerParams(
            dimension_semantics=("parallel",),   # batch tiles independent (megacore)
            vmem_limit_bytes=_VMEM_LIMIT),
        cost_estimate=pl.CostEstimate(
            flops=int(flops), transcendentals=int(B),
            bytes_accessed=bytes_accessed),
    )(x, w1t, b1c, w2t, b2c, w3r, b3c)

    # Layout plumbing back to the (B, 1) module output.
    return out[0, :].reshape(B, 1)


def init_params(key, input_size):
    # Deterministic init mimicking nn.Linear's uniform(-1/sqrt(fan_in), 1/sqrt(fan_in)).
    ks = jax.random.split(key, 6)

    def lin(kw, kb, fan_in, fan_out):
        bound = 1.0 / jnp.sqrt(jnp.float32(fan_in))
        w = jax.random.uniform(kw, (fan_in, fan_out), jnp.float32, -bound, bound)
        b = jax.random.uniform(kb, (1, fan_out), jnp.float32, -bound, bound)
        return w, b

    w1, b1 = lin(ks[0], ks[1], input_size, 64)
    w2, b2 = lin(ks[2], ks[3], 64, 32)
    w3, b3 = lin(ks[4], ks[5], 32, 1)
    return w1, b1, w2, b2, w3, b3


if __name__ == "__main__":
    key = jax.random.PRNGKey(0)
    k_x, k_p = jax.random.split(key)

    batch = 300            # not a multiple of the tile -> exercises the ragged last block
    input_size = 16
    x = jax.random.normal(k_x, (batch, input_size), jnp.float32)
    params = init_params(k_p, input_size)

    # Plain-JAX reference of the same forward pass.
    w1, b1, w2, b2, w3, b3 = params
    h1 = jnp.maximum(x @ w1 + b1, 0.0)
    h2 = jnp.maximum(h1 @ w2 + b2, 0.0)
    ref = jax.nn.sigmoid(h2 @ w3 + b3)

    # f32 path with a small tile so this toy example spans multiple grid steps.
    out = jax.block_until_ready(
        mlp_forward(x, params, block_batch=128, mxu_in_bf16=False))
    assert out.shape == (batch, 1)
    assert jnp.allclose(out, ref, atol=1e-5, rtol=1e-5)

    # Default path: bf16 MXU inputs, automatic tile/VMEM budgeting.
    out_bf16 = jax.block_until_ready(mlp_forward(x, params))
    assert out_bf16.shape == (batch, 1)
    assert jnp.allclose(out_bf16, ref, atol=5e-2, rtol=5e-2)

    print("KERNEL_OK")
</pallas_src>

<mosaic_0001>
module attributes {stable_mosaic.version = 11 : i64} {
  func.func @mlp_kernel(%arg0: i32, %arg1: memref<128x16xf32, #tpu.memory_space<vmem>>, %arg2: memref<64x16xf32, #tpu.memory_space<vmem>>, %arg3: memref<64x1xf32, #tpu.memory_space<vmem>>, %arg4: memref<32x64xf32, #tpu.memory_space<vmem>>, %arg5: memref<32x1xf32, #tpu.memory_space<vmem>>, %arg6: memref<1x32xf32, #tpu.memory_space<vmem>>, %arg7: memref<1x1xf32, #tpu.memory_space<vmem>>, %arg8: memref<1x128xf32, #tpu.memory_space<vmem>>) attributes {dimension_semantics = [#tpu.dimension_semantics<parallel>], iteration_bounds = array<i64: 3>, scalar_prefetch = 0 : i64, scratch_operands = 0 : i64, tpu.core_type = #tpu.core_type<tc>, window_params = [{transform_indices = @transform_0, window_bounds = array<i64: 128, 16>}, {pipeline_mode = #tpu.pipeline_mode<synchronous>, transform_indices = @transform_1, window_bounds = array<i64: 64, 16>}, {pipeline_mode = #tpu.pipeline_mode<synchronous>, transform_indices = @transform_2, window_bounds = array<i64: 64, 1>}, {pipeline_mode = #tpu.pipeline_mode<synchronous>, transform_indices = @transform_3, window_bounds = array<i64: 32, 64>}, {pipeline_mode = #tpu.pipeline_mode<synchronous>, transform_indices = @transform_4, window_bounds = array<i64: 32, 1>}, {pipeline_mode = #tpu.pipeline_mode<synchronous>, transform_indices = @transform_5, window_bounds = array<i64: 1, 32>}, {pipeline_mode = #tpu.pipeline_mode<synchronous>, transform_indices = @transform_6, window_bounds = array<i64: 1, 1>}, {transform_indices = @transform_7, window_bounds = array<i64: 1, 128>}]} {
    %c0 = arith.constant 0 : index
    %c0_0 = arith.constant 0 : index
    %0 = vector.load %arg1[%c0, %c0_0] : memref<128x16xf32, #tpu.memory_space<vmem>>, vector<128x16xf32>
    %c0_1 = arith.constant 0 : index
    %c0_2 = arith.constant 0 : index
    %1 = vector.load %arg3[%c0_1, %c0_2] : memref<64x1xf32, #tpu.memory_space<vmem>>, vector<64x1xf32>
    %c0_3 = arith.constant 0 : index
    %c0_4 = arith.constant 0 : index
    %2 = vector.load %arg5[%c0_3, %c0_4] : memref<32x1xf32, #tpu.memory_space<vmem>>, vector<32x1xf32>
    %c0_5 = arith.constant 0 : index
    %c0_6 = arith.constant 0 : index
    %3 = vector.load %arg7[%c0_5, %c0_6] : memref<1x1xf32, #tpu.memory_space<vmem>>, vector<1x1xf32>
    %c0_7 = arith.constant 0 : index
    %c0_8 = arith.constant 0 : index
    %4 = vector.load %arg2[%c0_7, %c0_8] : memref<64x16xf32, #tpu.memory_space<vmem>>, vector<64x16xf32>
    %cst = arith.constant dense<0.000000e+00> : vector<64x128xf32>
    %5 = tpu.matmul %4, %0, %cst {dimension_numbers = #tpu.dot_dimension_numbers<[1], [1], [0], [0], [0, 0, 1, 0], [], []>} : vector<64x16xf32>, vector<128x16xf32>, vector<64x128xf32> -> vector<64x128xf32>
    %6 = vector.broadcast %1 : vector<64x1xf32> to vector<64x128xf32>
    %7 = arith.addf %5, %6 : vector<64x128xf32>
    %cst_9 = arith.constant 0.000000e+00 : f32
    %8 = vector.broadcast %cst_9 : f32 to vector<64x128xf32>
    %9 = arith.maximumf %7, %8 : vector<64x128xf32>
    %c0_10 = arith.constant 0 : index
    %c0_11 = arith.constant 0 : index
    %10 = vector.load %arg4[%c0_10, %c0_11] : memref<32x64xf32, #tpu.memory_space<vmem>>, vector<32x64xf32>
    %cst_12 = arith.constant dense<0.000000e+00> : vector<32x128xf32>
    %11 = tpu.matmul %10, %9, %cst_12 {dimension_numbers = #tpu.dot_dimension_numbers<[1], [0], [0], [1], [0, 0, 1, 1], [], []>} : vector<32x64xf32>, vector<64x128xf32>, vector<32x128xf32> -> vector<32x128xf32>
    %12 = vector.broadcast %2 : vector<32x1xf32> to vector<32x128xf32>
    %13 = arith.addf %11, %12 : vector<32x128xf32>
    %cst_13 = arith.constant 0.000000e+00 : f32
    %14 = vector.broadcast %cst_13 : f32 to vector<32x128xf32>
    %15 = arith.maximumf %13, %14 : vector<32x128xf32>
    %c0_14 = arith.constant 0 : index
    %c0_15 = arith.constant 0 : index
    %16 = vector.load %arg6[%c0_14, %c0_15] : memref<1x32xf32, #tpu.memory_space<vmem>>, vector<1x32xf32>
    %cst_16 = arith.constant dense<0.000000e+00> : vector<1x128xf32>
    %17 = tpu.matmul %16, %15, %cst_16 {dimension_numbers = #tpu.dot_dimension_numbers<[1], [0], [0], [1], [0, 0, 1, 1], [], []>} : vector<1x32xf32>, vector<32x128xf32>, vector<1x128xf32> -> vector<1x128xf32>
    %18 = vector.broadcast %3 : vector<1x1xf32> to vector<1x128xf32>
    %19 = arith.addf %17, %18 : vector<1x128xf32>
    %20 = arith.negf %19 : vector<1x128xf32>
    %21 = math.exp %20 : vector<1x128xf32>
    %cst_17 = arith.constant 1.000000e+00 : f32
    %22 = vector.broadcast %cst_17 : f32 to vector<1x128xf32>
    %23 = arith.addf %22, %21 : vector<1x128xf32>
    %24 = arith.divf %22, %23 : vector<1x128xf32>
    %c0_18 = arith.constant 0 : index
    %c0_19 = arith.constant 0 : index
    %25 = vector.load %arg8[%c0_18, %c0_19] : memref<1x128xf32, #tpu.memory_space<vmem>>, vector<1x128xf32>
    tpu.vector_store %arg8[%c0_18, %c0_19], %24 {strides = array<i32>} : memref<1x128xf32, #tpu.memory_space<vmem>>, vector<1x128xf32>,
    return
  }
  func.func @transform_0(%arg0: i32) -> (i32, i32) {
    %c0_i32 = arith.constant 0 : i32
    %c0_i32_0 = arith.constant 0 : i32
    return %arg0, %c0_i32 : i32, i32
  }
  func.func @transform_1(%arg0: i32) -> (i32, i32) {
    %c0_i32 = arith.constant 0 : i32
    %c0_i32_0 = arith.constant 0 : i32
    %c0_i32_1 = arith.constant 0 : i32
    return %c0_i32, %c0_i32_0 : i32, i32
  }
  func.func @transform_2(%arg0: i32) -> (i32, i32) {
    %c0_i32 = arith.constant 0 : i32
    %c0_i32_0 = arith.constant 0 : i32
    %c0_i32_1 = arith.constant 0 : i32
    return %c0_i32, %c0_i32_0 : i32, i32
  }
  func.func @transform_3(%arg0: i32) -> (i32, i32) {
    %c0_i32 = arith.constant 0 : i32
    %c0_i32_0 = arith.constant 0 : i32
    %c0_i32_1 = arith.constant 0 : i32
    return %c0_i32, %c0_i32_0 : i32, i32
  }
  func.func @transform_4(%arg0: i32) -> (i32, i32) {
    %c0_i32 = arith.constant 0 : i32
    %c0_i32_0 = arith.constant 0 : i32
    %c0_i32_1 = arith.constant 0 : i32
    return %c0_i32, %c0_i32_0 : i32, i32
  }
  func.func @transform_5(%arg0: i32) -> (i32, i32) {
    %c0_i32 = arith.constant 0 : i32
    %c0_i32_0 = arith.constant 0 : i32
    %c0_i32_1 = arith.constant 0 : i32
    return %c0_i32, %c0_i32_0 : i32, i32
  }
  func.func @transform_6(%arg0: i32) -> (i32, i32) {
    %c0_i32 = arith.constant 0 : i32
    %c0_i32_0 = arith.constant 0 : i32
    %c0_i32_1 = arith.constant 0 : i32
    return %c0_i32, %c0_i32_0 : i32, i32
  }
  func.func @transform_7(%arg0: i32) -> (i32, i32) {
    %c0_i32 = arith.constant 0 : i32
    %c0_i32_0 = arith.constant 0 : i32
    return %c0_i32, %arg0 : i32, i32
  }
}

</mosaic_0001>

<llo_original>
// kernel: tpu_custom_call.1
$region0: #{tpu_custom_call.1}
  #allocation0 [shape = 'u32[]', space=smem, size = 0x4, offset = 0x4, fixed_abs, tag = 'smem constant byte address 0x4 - core index']
  #allocation1 [shape = 'u32[144,128]{1,0:T(1,128)}', space=vmem, size = 0x12000, scoped, tag = 'internal scratch']
  #allocation2 [shape = 'f32[1,1]{1,0:T(1,128)S(1)}', space=vmem, size = 0x200, scoped, tag = 'scoped memory for tpu_custom_call.1']
  %s0 = inlined_call_operand.vmem [shape: f32[300,16], index: 0, kind: input, shape index: {}]
  %s1 = inlined_call_operand.vmem [shape: f32[64,16], index: 1, kind: input, shape index: {}]
  %s2 = inlined_call_operand.vmem [shape: f32[64,1], index: 2, kind: input, shape index: {}]
  %s3 = inlined_call_operand.vmem [shape: f32[32,64], index: 3, kind: input, shape index: {}]
  %s4 = inlined_call_operand.vmem [shape: f32[32,1], index: 4, kind: input, shape index: {}]
  %s5 = inlined_call_operand.vmem [shape: f32[1,32], index: 5, kind: input, shape index: {}]
  %s6 = inlined_call_operand.<no memory space> [shape: f32[1,1], index: 6, kind: input, shape index: {}]
  %s7 = inlined_call_operand.hbm [shape: f32[1,300], index: 7, kind: output, shape index: {}]
  %s8 = sld [smem:[#allocation0]]
  $region61: #{tpu_custom_call.1} parent=0
    _
  %s10 = ssub.s32 1, %s8
  %s11 = scalar_select 0, %s10, %s8
  %v12 = vstv %s6
  %13 = vst [vmem:[#allocation2] sm:$0x1] %v12
  $region1: #{tpu_custom_call.1} parent=0
    #allocation3 [shape = 'u8[1024]{0}', space=vmem, size = 0x400, scoped, tag = 'output window, operand 0']
    #allocation4 [shape = 's32[2]{0}', space=sflag, size = 0x8, scoped, tag = 'scoped memory for tpu_custom_call.1']
    %14 = vsyncpa [#allocation4], 0
    %s15 = scalar_lea.sflag [#allocation4], 1
    %16 = vsyncpa %s15, 0
    loop: start=0, step=1, limit=5
    $region2: #{tpu_custom_call.1} parent=1 // loop_pre_header
      _
    $region3: #{tpu_custom_call.1} parent=1 // loop_header
      %s18 = sphi 0, %s22
      %p19 = scmp.ge.s32.totalorder %s18, 5
      %s28 = sphi 0, %s30
      %s31 = sphi 0, %s28
      %s32 = sphi 0, %s31
      %s48 = sphi 0, %s32
      %s52 = sphi 0, %s52
      %s54 = sphi 0, %s52
      %s55 = sphi 0, %s54
      %s69 = sphi 0, %s55
      %s73 = sphi 0, %s73
      %s75 = sphi 0, %s73
      %s76 = sphi 0, %s75
      %s90 = sphi 0, %s76
      %s94 = sphi 0, %s94
      %s96 = sphi 0, %s94
      %s97 = sphi 0, %s96
      %s111 = sphi 0, %s97
      %s115 = sphi 0, %s115
      %s117 = sphi 0, %s115
      %s118 = sphi 0, %s117
      %s132 = sphi 0, %s118
      %s136 = sphi 0, %s136
      %s138 = sphi 0, %s136
      %s139 = sphi 0, %s138
      %s153 = sphi 0, %s139
      %s157 = sphi 0, %s157
      %s159 = sphi 0, %s157
      %s160 = sphi 0, %s159
      %s174 = sphi 0, %s160
      %s180 = sphi 0, %s182
      %s183 = sphi 0, %s180
      %s184 = sphi 0, %s183
      %s200 = sphi 0, %s184
    $region4: #{tpu_custom_call.1} parent=1 // loop_header_branch
      %21 = sbr.rel (%p19) target = $region8
    $region5: #{tpu_custom_call.1} parent=1 // loop_body
      %s23 = ssub.s32 %s18, 1
      %s24 = ssub.s32 %s18, 2
      %s25 = sadd.s32 %s18, 1
      %s26 = ssub.s32 %s18, %s25
      %p27 = scmp.eq.s32.totalorder %s26, 0
      %s29 = sadd.s32 %s28, 1
      %s30 = scalar_select %p27, %s28, %s29
      %p33 = pneg %p27
      %p34 = scmp.eq.s32.totalorder %s18, 2
      %p35 = por %p33, %p34
      %p36 = scmp.ne.s32.totalorder %s28, %s31
      %p37 = scmp.eq.s32.totalorder %s18, 0
      %p38 = por %p36, %p37
      %p39 = scmp.ne.s32.totalorder %s28, %s31
      %p40 = scmp.eq.s32.totalorder %s23, 2
      %p41 = por %p39, %p40
      %p42 = scmp.ne.s32.totalorder %s31, %s32
      %p43 = scmp.eq.s32.totalorder %s23, 0
      %p44 = por %p42, %p43
      %p45 = scmp.ne.s32.totalorder %s31, %s32
      %p46 = scmp.eq.s32.totalorder %s24, 2
      %p47 = por %p45, %p46
      %p49 = scmp.ne.s32.totalorder %s32, %s48
      %p50 = scmp.eq.s32.totalorder %s24, 0
      %p51 = por %p49, %p50
      %s53 = sadd.s32 %s52, 1
      %p56 = scmp.eq.s32.totalorder %s18, 2
      %p57 = scmp.ne.s32.totalorder %s52, %s54
      %p58 = scmp.eq.s32.totalorder %s18, 0
      %p59 = por %p57, %p58
      %p60 = scmp.ne.s32.totalorder %s52, %s54
      %p61 = scmp.eq.s32.totalorder %s23, 2
      %p62 = por %p60, %p61
      %p63 = scmp.ne.s32.totalorder %s54, %s55
      %p64 = scmp.eq.s32.totalorder %s23, 0
      %p65 = por %p63, %p64
      %p66 = scmp.ne.s32.totalorder %s54, %s55
      %p67 = scmp.eq.s32.totalorder %s24, 2
      %p68 = por %p66, %p67
      %p70 = scmp.ne.s32.totalorder %s55, %s69
      %p71 = scmp.eq.s32.totalorder %s24, 0
      %p72 = por %p70, %p71
      %s74 = sadd.s32 %s73, 1
      %p77 = scmp.eq.s32.totalorder %s18, 2
      %p78 = scmp.ne.s32.totalorder %s73, %s75
      %p79 = scmp.eq.s32.totalorder %s18, 0
      %p80 = por %p78, %p79
      %p81 = scmp.ne.s32.totalorder %s73, %s75
      %p82 = scmp.eq.s32.totalorder %s23, 2
      %p83 = por %p81, %p82
      %p84 = scmp.ne.s32.totalorder %s75, %s76
      %p85 = scmp.eq.s32.totalorder %s23, 0
      %p86 = por %p84, %p85
      %p87 = scmp.ne.s32.totalorder %s75, %s76
      %p88 = scmp.eq.s32.totalorder %s24, 2
      %p89 = por %p87, %p88
      %p91 = scmp.ne.s32.totalorder %s76, %s90
      %p92 = scmp.eq.s32.totalorder %s24, 0
      %p93 = por %p91, %p92
      %s95 = sadd.s32 %s94, 1
      %p98 = scmp.eq.s32.totalorder %s18, 2
      %p99 = scmp.ne.s32.totalorder %s94, %s96
      %p100 = scmp.eq.s32.totalorder %s18, 0
      %p101 = por %p99, %p100
      %p102 = scmp.ne.s32.totalorder %s94, %s96
      %p103 = scmp.eq.s32.totalorder %s23, 2
      %p104 = por %p102, %p103
      %p105 = scmp.ne.s32.totalorder %s96, %s97
      %p106 = scmp.eq.s32.totalorder %s23, 0
      %p107 = por %p105, %p106
      %p108 = scmp.ne.s32.totalorder %s96, %s97
      %p109 = scmp.eq.s32.totalorder %s24, 2
      %p110 = por %p108, %p109
      %p112 = scmp.ne.s32.totalorder %s97, %s111
      %p113 = scmp.eq.s32.totalorder %s24, 0
      %p114 = por %p112, %p113
      %s116 = sadd.s32 %s115, 1
      %p119 = scmp.eq.s32.totalorder %s18, 2
      %p120 = scmp.ne.s32.totalorder %s115, %s117
      %p121 = scmp.eq.s32.totalorder %s18, 0
      %p122 = por %p120, %p121
      %p123 = scmp.ne.s32.totalorder %s115, %s117
      %p124 = scmp.eq.s32.totalorder %s23, 2
      %p125 = por %p123, %p124
      %p126 = scmp.ne.s32.totalorder %s117, %s118
      %p127 = scmp.eq.s32.totalorder %s23, 0
      %p128 = por %p126, %p127
      %p129 = scmp.ne.s32.totalorder %s117, %s118
      %p130 = scmp.eq.s32.totalorder %s24, 2
      %p131 = por %p129, %p130
      %p133 = scmp.ne.s32.totalorder %s118, %s132
      %p134 = scmp.eq.s32.totalorder %s24, 0
      %p135 = por %p133, %p134
      %s137 = sadd.s32 %s136, 1
      %p140 = scmp.eq.s32.totalorder %s18, 2
      %p141 = scmp.ne.s32.totalorder %s136, %s138
      %p142 = scmp.eq.s32.totalorder %s18, 0
      %p143 = por %p141, %p142
      %p144 = scmp.ne.s32.totalorder %s136, %s138
      %p145 = scmp.eq.s32.totalorder %s23, 2
      %p146 = por %p144, %p145
      %p147 = scmp.ne.s32.totalorder %s138, %s139
      %p148 = scmp.eq.s32.totalorder %s23, 0
      %p149 = por %p147, %p148
      %p150 = scmp.ne.s32.totalorder %s138, %s139
      %p151 = scmp.eq.s32.totalorder %s24, 2
      %p152 = por %p150, %p151
      %p154 = scmp.ne.s32.totalorder %s139, %s153
      %p155 = scmp.eq.s32.totalorder %s24, 0
      %p156 = por %p154, %p155
      %s158 = sadd.s32 %s157, 1
      %p161 = scmp.eq.s32.totalorder %s18, 2
      %p162 = scmp.ne.s32.totalorder %s157, %s159
      %p163 = scmp.eq.s32.totalorder %s18, 0
      %p164 = por %p162, %p163
      %p165 = scmp.ne.s32.totalorder %s157, %s159
      %p166 = scmp.eq.s32.totalorder %s23, 2
      %p167 = por %p165, %p166
      %p168 = scmp.ne.s32.totalorder %s159, %s160
      %p169 = scmp.eq.s32.totalorder %s23, 0
      %p170 = por %p168, %p169
      %p171 = scmp.ne.s32.totalorder %s159, %s160
      %p172 = scmp.eq.s32.totalorder %s24, 2
      %p173 = por %p171, %p172
      %p175 = scmp.ne.s32.totalorder %s160, %s174
      %p176 = scmp.eq.s32.totalorder %s24, 0
      %p177 = por %p175, %p176
      %s178 = ssub.s32 %s18, %s25
      %p179 = scmp.eq.s32.totalorder %s178, 0
      %s181 = sadd.s32 %s180, 1
      %s182 = scalar_select %p179, %s180, %s181
      %p185 = pneg %p179
      %p186 = scmp.eq.s32.totalorder %s18, 2
      %p187 = por %p185, %p186
      %p188 = scmp.ne.s32.totalorder %s180, %s183
      %p189 = scmp.eq.s32.totalorder %s18, 0
      %p190 = por %p188, %p189
      %p191 = scmp.ne.s32.totalorder %s180, %s183
      %p192 = scmp.eq.s32.totalorder %s23, 2
      %p193 = por %p191, %p192
      %p194 = scmp.ne.s32.totalorder %s183, %s184
      %p195 = scmp.eq.s32.totalorder %s23, 0
      %p196 = por %p194, %p195
      %p197 = scmp.ne.s32.totalorder %s183, %s184
      %p198 = scmp.eq.s32.totalorder %s24, 2
      %p199 = por %p197, %p198
      %p201 = scmp.ne.s32.totalorder %s184, %s200
      %p202 = scmp.eq.s32.totalorder %s24, 0
      %p203 = por %p201, %p202
      %p204 = scmp.le.s32.totalorder 1, %s18
      %p205 = scmp.lt.s32.totalorder %s18, 4
      %p206 = pnand %p204, %p205
      %p207 = pneg %p206
      // Predicated region
      $region9: #{tpu_custom_call.1} parent=5 // pred_check
        _
      $region10: #{tpu_custom_call.1} parent=5 // pred_check_branch
        %209 = sbr.rel (%p206) target = $region12
      $region11: #{tpu_custom_call.1} parent=5 // pred_region
        %s210 = ssub.s32 %s18, 1
        // Predicated region
        $region13: #{tpu_custom_call.1} parent=11 // pred_check
          %p211 = pneg %p65
        $region14: #{tpu_custom_call.1} parent=11 // pred_check_branch
          %213 = sbr.rel (%p211) target = $region16
        $region15: #{tpu_custom_call.1} parent=11 // pred_region
          _
        $region16: #{tpu_custom_call.1} parent=11 // pred_fallthru
          _
        // Predicated region
        $region17: #{tpu_custom_call.1} parent=11 // pred_check
          %p214 = pneg %p86
        $region18: #{tpu_custom_call.1} parent=11 // pred_check_branch
          %216 = sbr.rel (%p214) target = $region20
        $region19: #{tpu_custom_call.1} parent=11 // pred_region
          _
        $region20: #{tpu_custom_call.1} parent=11 // pred_fallthru
          _
        // Predicated region
        $region21: #{tpu_custom_call.1} parent=11 // pred_check
          %p217 = pneg %p107
        $region22: #{tpu_custom_call.1} parent=11 // pred_check_branch
          %219 = sbr.rel (%p217) target = $region24
        $region23: #{tpu_custom_call.1} parent=11 // pred_region
          _
        $region24: #{tpu_custom_call.1} parent=11 // pred_fallthru
          _
        // Predicated region
        $region25: #{tpu_custom_call.1} parent=11 // pred_check
          %p220 = pneg %p128
        $region26: #{tpu_custom_call.1} parent=11 // pred_check_branch
          %222 = sbr.rel (%p220) target = $region28
        $region27: #{tpu_custom_call.1} parent=11 // pred_region
          _
        $region28: #{tpu_custom_call.1} parent=11 // pred_fallthru
          _
        // Predicated region
        $region29: #{tpu_custom_call.1} parent=11 // pred_check
          %p223 = pneg %p149
        $region30: #{tpu_custom_call.1} parent=11 // pred_check_branch
          %225 = sbr.rel (%p223) target = $region32
        $region31: #{tpu_custom_call.1} parent=11 // pred_region
          _
        $region32: #{tpu_custom_call.1} parent=11 // pred_fallthru
          _
        // Predicated region
        $region33: #{tpu_custom_call.1} parent=11 // pred_check
          %p226 = pneg %p170
        $region34: #{tpu_custom_call.1} parent=11 // pred_check_branch
          %228 = sbr.rel (%p226) target = $region36
        $region35: #{tpu_custom_call.1} parent=11 // pred_region
          _
        $region36: #{tpu_custom_call.1} parent=11 // pred_fallthru
          _
      $region12: #{tpu_custom_call.1} parent=5 // pred_fallthru
        _
      %p229 = scmp.lt.s32.totalorder %s18, 3
      // Predicated region
      $region37: #{tpu_custom_call.1} parent=5 // pred_check
        %p230 = pneg %p229
      $region38: #{tpu_custom_call.1} parent=5 // pred_check_branch
        %232 = sbr.rel (%p230) target = $region40
      $region39: #{tpu_custom_call.1} parent=5 // pred_region
        // Predicated region
        $region41: #{tpu_custom_call.1} parent=39 // pred_check
          %p233 = pneg %p38
        $region42: #{tpu_custom_call.1} parent=39 // pred_check_branch
          %235 = sbr.rel (%p233) target = $region44
        $region43: #{tpu_custom_call.1} parent=39 // pred_region
          %s236 = smul.u32 16, %s18
          %s237 = ssub.s32 38, %s236
          %p238 = scmp.lt.s32.totalorder %s237, 16
          %s239 = scalar_select %p238, %s237, 16
          %s240 = smul.u32 128, %s239
          %p241 = scmp.lt.s32.totalorder %s236, 37
          %s242 = scalar_select %p241, %s236, 37
          %s243 = smul.addr %s242, 8
          %s244 = scalar_lea.vmem %s0, %s243
          %s245 = smul.u32 16, %s18
          %s246 = ssub.s32 38, %s245
          %p247 = scmp.lt.s32.totalorder %s246, 16
          %s248 = scalar_select %p247, %s246, 16
          %s249 = smul.u32 128, %s248
        $region44: #{tpu_custom_call.1} parent=39 // pred_fallthru
          _
      $region40: #{tpu_custom_call.1} parent=5 // pred_fallthru
        _
      %p250 = scmp.le.s32.totalorder 1, %s18
      %p251 = scmp.lt.s32.totalorder %s18, 4
      %p252 = pnand %p250, %p251
      %p253 = pneg %p252
      // Predicated region
      $region45: #{tpu_custom_call.1} parent=5 // pred_check
        _
      $region46: #{tpu_custom_call.1} parent=5 // pred_check_branch
        %255 = sbr.rel (%p252) target = $region48
      $region47: #{tpu_custom_call.1} parent=5 // pred_region
        %s256 = ssub.s32 %s18, 1
        %s257 = smul.u32 16, %s23
        %s258 = ssub.s32 38, %s257
        %p259 = scmp.lt.s32.totalorder %s258, 16
        %s260 = scalar_select %p259, %s258, 16
        %s261 = smul.u32 128, %s260
        %p262 = scmp.lt.s32.totalorder %s257, 37
        %s263 = scalar_select %p262, %s257, 37
        %s264 = smul.addr %s263, 8
        %s265 = scalar_lea.vmem %s0, %s264
        %p266 = pneg %p44
        %p267 = pneg %p41
        %p268 = pneg %p65
        %p269 = pneg %p62
        %p270 = pneg %p86
        %p271 = pneg %p83
        %p272 = pneg %p107
        %p273 = pneg %p104
        %p274 = pneg %p128
        %p275 = pneg %p125
        %p276 = pneg %p149
        %p277 = pneg %p146
        %p278 = pneg %p170
        %p279 = pneg %p167
        %p280 = pneg %p196
        %p281 = pneg %p193
        %s282 = sand.u32 %s183, 1
        %s283 = scalar_lea.sflag [#allocation4], %s282
        %s284 = sand.u32 %s183, 1
        %s285 = scalar_lea.vmem [#allocation3], %s284
        %s286 = smul.u32 16, %s23
        %s287 = ssub.s32 38, %s286
        %p288 = scmp.lt.s32.totalorder %s287, 16
        %s289 = scalar_select %p288, %s287, 16
        %s290 = smul.u32 128, %s289
        %p291 = scmp.lt.s32.totalorder %s286, 37
        %s292 = scalar_select %p291, %s286, 37
        %s293 = smul.addr %s292, 8
        %s294 = scalar_lea.vmem %s0, %s293
        %s295 = smul.u32 16, %s23
        %s296 = ssub.s32 38, %s295
        %p297 = scmp.lt.s32.totalorder %s296, 16
        %s298 = scalar_select %p297, %s296, 16
        %s299 = smul.u32 128, %s298
        %v300 = vld [vmem:[%s294] sm:$0xff]
        %v301 = vld [vmem:[%s294 + $0x8] sm:$0xff]
        %v302 = vld [vmem:[%s294 + $0x10] sm:$0xff]
        %v303 = vld [vmem:[%s294 + $0x18] sm:$0xff]
        %v304 = vld [vmem:[%s294 + $0x20] sm:$0xff]
        %v305 = vld [vmem:[%s294 + $0x28] sm:$0xff]
        %v306 = vld [vmem:[%s294 + $0x30] sm:$0xff]
        %v307 = vld [vmem:[%s294 + $0x38] sm:$0xff]
        %v308 = vld [vmem:[%s294 + $0x40] sm:$0xff]
        %v309 = vld [vmem:[%s294 + $0x48] sm:$0xff]
        %v310 = vld [vmem:[%s294 + $0x50] sm:$0xff]
        %v311 = vld [vmem:[%s294 + $0x58] sm:$0xff]
        %v312 = vld [vmem:[%s294 + $0x60] sm:$0xff]
        %v313 = vld [vmem:[%s294 + $0x68] sm:$0xff]
        %v314 = vld [vmem:[%s294 + $0x70] sm:$0xff]
        %v315 = vld [vmem:[%s294 + $0x78] sm:$0xff]
        %v316 = vld [vmem:[%s2] sm:$0xff]
        %v317 = vld [vmem:[%s2 + $0x8] sm:$0xff]
        %v318 = vld [vmem:[%s2 + $0x10] sm:$0xff]
        %v319 = vld [vmem:[%s2 + $0x18] sm:$0xff]
        %v320 = vld [vmem:[%s2 + $0x20] sm:$0xff]
        %v321 = vld [vmem:[%s2 + $0x28] sm:$0xff]
        %v322 = vld [vmem:[%s2 + $0x30] sm:$0xff]
        %v323 = vld [vmem:[%s2 + $0x38] sm:$0xff]
        %v324 = vld [vmem:[%s4] sm:$0xff]
        %v325 = vld [vmem:[%s4 + $0x8] sm:$0xff]
        %v326 = vld [vmem:[%s4 + $0x10] sm:$0xff]
        %v327 = vld [vmem:[%s4 + $0x18] sm:$0xff]
        %v328 = vld [vmem:[#allocation2] sm:$0x1]
        %v329 = vld [vmem:[%s1] sm:$0xff]
        %v330 = vld [vmem:[%s1 + $0x8] sm:$0xff]
        %v331 = vld [vmem:[%s1 + $0x10] sm:$0xff]
        %v332 = vld [vmem:[%s1 + $0x18] sm:$0xff]
        %v333 = vld [vmem:[%s1 + $0x20] sm:$0xff]
        %v334 = vld [vmem:[%s1 + $0x28] sm:$0xff]
        %v335 = vld [vmem:[%s1 + $0x30] sm:$0xff]
        %v336 = vld [vmem:[%s1 + $0x38] sm:$0xff]
        %338 = vset.pattern.permute.xlu0 0
        %339 = vperm.xlu0 %338, %v316
        %v340 = vpop.permute.xlu0 %339
        %343 = vset.pattern.permute.xlu0 0
        %344 = vperm.xlu0 %343, %v317
        %v345 = vpop.permute.xlu0 %344
        %348 = vset.pattern.permute.xlu0 0
        %349 = vperm.xlu0 %348, %v318
        %v350 = vpop.permute.xlu0 %349
        %353 = vset.pattern.permute.xlu0 0
        %354 = vperm.xlu0 %353, %v319
        %v355 = vpop.permute.xlu0 %354
        %358 = vset.pattern.permute.xlu0 0
        %359 = vperm.xlu0 %358, %v320
        %v360 = vpop.permute.xlu0 %359
        %363 = vset.pattern.permute.xlu0 0
        %364 = vperm.xlu0 %363, %v321
        %v365 = vpop.permute.xlu0 %364
        %368 = vset.pattern.permute.xlu0 0
        %369 = vperm.xlu0 %368, %v322
        %v370 = vpop.permute.xlu0 %369
        %373 = vset.pattern.permute.xlu0 0
        %374 = vperm.xlu0 %373, %v323
        %v375 = vpop.permute.xlu0 %374
        %vm377 = vcmask 130048
        %v379 = vsel %vm377, %v329, 0
        %v382 = vsel %vm377, %v330, 0
        %v385 = vsel %vm377, %v331, 0
        %v388 = vsel %vm377, %v332, 0
        %v391 = vsel %vm377, %v333, 0
        %v394 = vsel %vm377, %v334, 0
        %v397 = vsel %vm377, %v335, 0
        %v400 = vsel %vm377, %v336, 0
        %v403 = vsel %vm377, %v300, 0
        %v406 = vsel %vm377, %v301, 0
        %v409 = vsel %vm377, %v302, 0
        %v412 = vsel %vm377, %v303, 0
        %v415 = vsel %vm377, %v304, 0
        %v418 = vsel %vm377, %v305, 0
        %v421 = vsel %vm377, %v306, 0
        %v424 = vsel %vm377, %v307, 0
        %v427 = vsel %vm377, %v308, 0
        %v430 = vsel %vm377, %v309, 0
        %v433 = vsel %vm377, %v310, 0
        %v436 = vsel %vm377, %v311, 0
        %v439 = vsel %vm377, %v312, 0
        %v442 = vsel %vm377, %v313, 0
        %v445 = vsel %vm377, %v314, 0
        %v448 = vsel %vm377, %v315, 0
        %450 = vmatprep.subr.mxu0 0.0
        %451 = vmatpush1.xpose.msra.mxu0 %v403
        %452 = vmatprep.subr.mxu0 0.0
        %453 = vmatpush1.xpose.msra.mxu0 %v406
        %454 = vmatprep.subr.mxu0 0.0
        %455 = vmatpush1.xpose.msra.mxu0 %v409
        %456 = vmatprep.subr.mxu0 0.0
        %457 = vmatpush1.xpose.msra.mxu0 %v412
        %458 = vmatprep.subr.mxu0 0.0
        %459 = vmatpush1.xpose.msra.mxu0 %v415
        %460 = vmatprep.subr.mxu0 0.0
        %461 = vmatpush1.xpose.msra.mxu0 %v418
        %462 = vmatprep.subr.mxu0 0.0
        %463 = vmatpush1.xpose.msra.mxu0 %v421
        %464 = vmatprep.subr.mxu0 0.0
        %465 = vmatpush1.xpose.msra.mxu0 %v424
        %466 = vmatprep.subr.mxu0 0.0
        %467 = vmatpush1.xpose.msra.mxu0 %v427
        %468 = vmatprep.subr.mxu0 0.0
        %469 = vmatpush1.xpose.msra.mxu0 %v430
        %470 = vmatprep.subr.mxu0 0.0
        %471 = vmatpush1.xpose.msra.mxu0 %v433
        %472 = vmatprep.subr.mxu0 0.0
        %473 = vmatpush1.xpose.msra.mxu0 %v436
        %474 = vmatprep.subr.mxu0 0.0
        %475 = vmatpush1.xpose.msra.mxu0 %v439
        %476 = vmatprep.subr.mxu0 0.0
        %477 = vmatpush1.xpose.msra.mxu0 %v442
        %478 = vmatprep.subr.mxu0 0.0
        %479 = vmatpush1.xpose.msra.mxu0 %v445
        %480 = vmatprep.subr.mxu0 0.0
        %481 = vmatpush1.xpose.msra.mxu0 %v448
        %482 = vmatprep.subr.mxu0 0.0
        %483 = vmatpush1.xpose.msra.mxu0 0.0
        %484 = vmatprep.subr.mxu0 0.0
        %485 = vmatpush1.xpose.msra.mxu0 0.0
        %486 = vmatprep.subr.mxu0 0.0
        %487 = vmatpush1.xpose.msra.mxu0 0.0
        %488 = vmatprep.subr.mxu0 0.0
        %489 = vmatpush1.xpose.msra.mxu0 0.0
        %490 = vmatprep.subr.mxu0 0.0
        %491 = vmatpush1.xpose.msra.mxu0 0.0
        %492 = vmatprep.subr.mxu0 0.0
        %493 = vmatpush1.xpose.msra.mxu0 0.0
        %494 = vmatprep.subr.mxu0 0.0
        %495 = vmatpush1.xpose.msra.mxu0 0.0
        %496 = vmatprep.subr.mxu0 0.0
        %497 = vmatpush1.xpose.msra.mxu0 0.0
        %498 = vmatprep.subr.mxu0 0.0
        %499 = vmatpush1.xpose.msra.mxu0 0.0
        %500 = vmatprep.subr.mxu0 0.0
        %501 = vmatpush1.xpose.msra.mxu0 0.0
        %502 = vmatprep.subr.mxu0 0.0
        %503 = vmatpush1.xpose.msra.mxu0 0.0
        %504 = vmatprep.subr.mxu0 0.0
        %505 = vmatpush1.xpose.msra.mxu0 0.0
        %506 = vmatprep.subr.mxu0 0.0
        %507 = vmatpush1.xpose.msra.mxu0 0.0
        %508 = vmatprep.subr.mxu0 0.0
        %509 = vmatpush1.xpose.msra.mxu0 0.0
        %510 = vmatprep.subr.mxu0 0.0
        %511 = vmatpush1.xpose.msra.mxu0 0.0
        %512 = vmatprep.subr.mxu0 0.0
        %513 = vmatpush1.xpose.msra.mxu0 0.0
        %514 = vmatprep.mubr.f32.mxu0 0.0
        %515 = vmatmul.mubr.f32.gmra.mrb[0].mxu0 %v379
        %v516 = vpop.f32.mrb[0].mxu0
        %v517 = vadd.f32 %v340, %v516
        %v518 = vpop.f32.mrb[0].mxu0
        %519 = vmatprep.mubr.f32.mxu0 0.0
        %520 = vmatmul.mubr.f32.gmra.mrb[0].mxu0 %v382
        %v521 = vpop.f32.mrb[0].mxu0
        %v522 = vadd.f32 %v345, %v521
        %v523 = vpop.f32.mrb[0].mxu0
        %524 = vmatprep.mubr.f32.mxu0 0.0
        %525 = vmatmul.mubr.f32.gmra.mrb[0].mxu0 %v385
        %v526 = vpop.f32.mrb[0].mxu0
        %v527 = vadd.f32 %v350, %v526
        %v528 = vpop.f32.mrb[0].mxu0
        %529 = vmatprep.mubr.f32.mxu0 0.0
        %530 = vmatmul.mubr.f32.gmra.mrb[0].mxu0 %v388
        %v531 = vpop.f32.mrb[0].mxu0
        %v532 = vadd.f32 %v355, %v531
        %v533 = vpop.f32.mrb[0].mxu0
        %534 = vmatprep.mubr.f32.mxu0 0.0
        %535 = vmatmul.mubr.f32.gmra.mrb[0].mxu0 %v391
        %v536 = vpop.f32.mrb[0].mxu0
        %v537 = vadd.f32 %v360, %v536
        %v538 = vpop.f32.mrb[0].mxu0
        %539 = vmatprep.mubr.f32.mxu0 0.0
        %540 = vmatmul.mubr.f32.gmra.mrb[0].mxu0 %v394
        %v541 = vpop.f32.mrb[0].mxu0
        %v542 = vadd.f32 %v365, %v541
        %v543 = vpop.f32.mrb[0].mxu0
        %544 = vmatprep.mubr.f32.mxu0 0.0
        %545 = vmatmul.mubr.f32.gmra.mrb[0].mxu0 %v397
        %v546 = vpop.f32.mrb[0].mxu0
        %v547 = vadd.f32 %v370, %v546
        %v548 = vpop.f32.mrb[0].mxu0
        %549 = vmatprep.mubr.f32.mxu0 0.0
        %550 = vmatmul.mubr.f32.gmra.mrb[0].mxu0 %v400
        %v551 = vpop.f32.mrb[0].mxu0
        %v552 = vadd.f32 %v375, %v551
        %v553 = vpop.f32.mrb[0].mxu0
        %554 = vdwg.mxu0
        %v555 = vmax.f32 %v517, 0.0
        %v556 = vmax.f32 %v522, 0.0
        %v557 = vmax.f32 %v527, 0.0
        %v558 = vmax.f32 %v532, 0.0
        %v559 = vmax.f32 %v537, 0.0
        %v560 = vmax.f32 %v542, 0.0
        %v561 = vmax.f32 %v547, 0.0
        %v562 = vmax.f32 %v552, 0.0
        %v563 = vld [vmem:[%s3] sm:$0xff]
        %v564 = vld [vmem:[%s3 + $0x8] sm:$0xff]
        %v565 = vld [vmem:[%s3 + $0x10] sm:$0xff]
        %v566 = vld [vmem:[%s3 + $0x18] sm:$0xff]
        %568 = vset.pattern.permute.xlu0 0
        %569 = vperm.xlu0 %568, %v324
        %v570 = vpop.permute.xlu0 %569
        %573 = vset.pattern.permute.xlu0 0
        %574 = vperm.xlu0 %573, %v325
        %v575 = vpop.permute.xlu0 %574
        %578 = vset.pattern.permute.xlu0 0
        %579 = vperm.xlu0 %578, %v326
        %v580 = vpop.permute.xlu0 %579
        %583 = vset.pattern.permute.xlu0 0
        %584 = vperm.xlu0 %583, %v327
        %v585 = vpop.permute.xlu0 %584
        %vm587 = vcmask 523264
        %v589 = vsel %vm587, %v563, 0
        %v592 = vsel %vm587, %v564, 0
        %v595 = vsel %vm587, %v565, 0
        %v598 = vsel %vm587, %v566, 0
        %600 = vmatprep.subr.mxu0 0.0
        %601 = vmatpush1.msra.mxu0 %v555
        %602 = vmatprep.subr.mxu0 0.0
        %603 = vmatpush1.msra.mxu0 %v556
        %604 = vmatprep.subr.mxu0 0.0
        %605 = vmatpush1.msra.mxu0 %v557
        %606 = vmatprep.subr.mxu0 0.0
        %607 = vmatpush1.msra.mxu0 %v558
        %608 = vmatprep.subr.mxu0 0.0
        %609 = vmatpush1.msra.mxu0 %v559
        %610 = vmatprep.subr.mxu0 0.0
        %611 = vmatpush1.msra.mxu0 %v560
        %612 = vmatprep.subr.mxu0 0.0
        %613 = vmatpush1.msra.mxu0 %v561
        %614 = vmatprep.subr.mxu0 0.0
        %615 = vmatpush1.msra.mxu0 %v562
        %616 = vmatprep.subr.mxu0 0.0
        %617 = vmatpush1.msra.mxu0 0.0
        %618 = vmatprep.subr.mxu0 0.0
        %619 = vmatpush1.msra.mxu0 0.0
        %620 = vmatprep.subr.mxu0 0.0
        %621 = vmatpush1.msra.mxu0 0.0
        %622 = vmatprep.subr.mxu0 0.0
        %623 = vmatpush1.msra.mxu0 0.0
        %624 = vmatprep.subr.mxu0 0.0
        %625 = vmatpush1.msra.mxu0 0.0
        %626 = vmatprep.subr.mxu0 0.0
        %627 = vmatpush1.msra.mxu0 0.0
        %628 = vmatprep.subr.mxu0 0.0
        %629 = vmatpush1.msra.mxu0 0.0
        %630 = vmatprep.subr.mxu0 0.0
        %631 = vmatpush1.msra.mxu0 0.0
        %632 = vmatprep.subr.mxu0 0.0
        %633 = vmatpush1.msra.mxu0 0.0
        %634 = vmatprep.subr.mxu0 0.0
        %635 = vmatpush1.msra.mxu0 0.0
        %636 = vmatprep.subr.mxu0 0.0
        %637 = vmatpush1.msra.mxu0 0.0
        %638 = vmatprep.subr.mxu0 0.0
        %639 = vmatpush1.msra.mxu0 0.0
        %640 = vmatprep.subr.mxu0 0.0
        %641 = vmatpush1.msra.mxu0 0.0
        %642 = vmatprep.subr.mxu0 0.0
        %643 = vmatpush1.msra.mxu0 0.0
        %644 = vmatprep.subr.mxu0 0.0
        %645 = vmatpush1.msra.mxu0 0.0
        %646 = vmatprep.subr.mxu0 0.0
        %647 = vmatpush1.msra.mxu0 0.0
        %648 = vmatprep.subr.mxu0 0.0
        %649 = vmatpush1.msra.mxu0 0.0
        %650 = vmatprep.subr.mxu0 0.0
        %651 = vmatpush1.msra.mxu0 0.0
        %652 = vmatprep.subr.mxu0 0.0
        %653 = vmatpush1.msra.mxu0 0.0
        %654 = vmatprep.subr.mxu0 0.0
        %655 = vmatpush1.msra.mxu0 0.0
        %656 = vmatprep.subr.mxu0 0.0
        %657 = vmatpush1.msra.mxu0 0.0
        %658 = vmatprep.subr.mxu0 0.0
        %659 = vmatpush1.msra.mxu0 0.0
        %660 = vmatprep.subr.mxu0 0.0
        %661 = vmatpush1.msra.mxu0 0.0
        %662 = vmatprep.subr.mxu0 0.0
        %663 = vmatpush1.msra.mxu0 0.0
        %664 = vmatprep.mubr.f32.mxu0 0.0
        %665 = vmatmul.mubr.f32.gmra.mrb[0].mxu0 %v589
        %v666 = vpop.f32.mrb[0].mxu0
        %v667 = vadd.f32 %v570, %v666
        %v668 = vpop.f32.mrb[0].mxu0
        %669 = vmatprep.mubr.f32.mxu0 0.0
        %670 = vmatmul.mubr.f32.gmra.mrb[0].mxu0 %v592
        %v671 = vpop.f32.mrb[0].mxu0
        %v672 = vadd.f32 %v575, %v671
        %v673 = vpop.f32.mrb[0].mxu0
        %674 = vmatprep.mubr.f32.mxu0 0.0
        %675 = vmatmul.mubr.f32.gmra.mrb[0].mxu0 %v595
        %v676 = vpop.f32.mrb[0].mxu0
        %v677 = vadd.f32 %v580, %v676
        %v678 = vpop.f32.mrb[0].mxu0
        %679 = vmatprep.mubr.f32.mxu0 0.0
        %680 = vmatmul.mubr.f32.gmra.mrb[0].mxu0 %v598
        %v681 = vpop.f32.mrb[0].mxu0
        %v682 = vadd.f32 %v585, %v681
        %v683 = vpop.f32.mrb[0].mxu0
        %684 = vdwg.mxu0
        %v685 = vmax.f32 %v667, 0.0
        %v686 = vmax.f32 %v672, 0.0
        %v687 = vmax.f32 %v677, 0.0
        %v688 = vmax.f32 %v682, 0.0
        %v689 = vld [vmem:[%s5] sm:$0x1]
        %691 = vset.pattern.permute.xlu0 0
        %692 = vperm.xlu0 %691, %v328
        %v693 = vpop.permute.xlu0 %692
        %v695 = vlaneseq
        %v696 = vshrl.u32 %v695, 7
        %v697 = vsub.s32 0, %v696
        %v698 = vrot.slane %v693, %v697
        %vm699 = vcmask 261120
        %v701 = vsel %vm699, %v689, 0
        %703 = vmatprep.subr.mxu0 0.0
        %704 = vmatpush1.msra.mxu0 %v685
        %705 = vmatprep.subr.mxu0 0.0
        %706 = vmatpush1.msra.mxu0 %v686
        %707 = vmatprep.subr.mxu0 0.0
        %708 = vmatpush1.msra.mxu0 %v687
        %709 = vmatprep.subr.mxu0 0.0
        %710 = vmatpush1.msra.mxu0 %v688
        %711 = vmatprep.subr.mxu0 0.0
        %712 = vmatpush1.msra.mxu0 0.0
        %713 = vmatprep.subr.mxu0 0.0
        %714 = vmatpush1.msra.mxu0 0.0
        %715 = vmatprep.subr.mxu0 0.0
        %716 = vmatpush1.msra.mxu0 0.0
        %717 = vmatprep.subr.mxu0 0.0
        %718 = vmatpush1.msra.mxu0 0.0
        %719 = vmatprep.subr.mxu0 0.0
        %720 = vmatpush1.msra.mxu0 0.0
        %721 = vmatprep.subr.mxu0 0.0
        %722 = vmatpush1.msra.mxu0 0.0
        %723 = vmatprep.subr.mxu0 0.0
        %724 = vmatpush1.msra.mxu0 0.0
        %725 = vmatprep.subr.mxu0 0.0
        %726 = vmatpush1.msra.mxu0 0.0
        %727 = vmatprep.subr.mxu0 0.0
        %728 = vmatpush1.msra.mxu0 0.0
        %729 = vmatprep.subr.mxu0 0.0
        %730 = vmatpush1.msra.mxu0 0.0
        %731 = vmatprep.subr.mxu0 0.0
        %732 = vmatpush1.msra.mxu0 0.0
        %733 = vmatprep.subr.mxu0 0.0
        %734 = vmatpush1.msra.mxu0 0.0
        %735 = vmatprep.subr.mxu0 0.0
        %736 = vmatpush1.msra.mxu0 0.0
        %737 = vmatprep.subr.mxu0 0.0
        %738 = vmatpush1.msra.mxu0 0.0
        %739 = vmatprep.subr.mxu0 0.0
        %740 = vmatpush1.msra.mxu0 0.0
        %741 = vmatprep.subr.mxu0 0.0
        %742 = vmatpush1.msra.mxu0 0.0
        %743 = vmatprep.subr.mxu0 0.0
        %744 = vmatpush1.msra.mxu0 0.0
        %745 = vmatprep.subr.mxu0 0.0
        %746 = vmatpush1.msra.mxu0 0.0
        %747 = vmatprep.subr.mxu0 0.0
        %748 = vmatpush1.msra.mxu0 0.0
        %749 = vmatprep.subr.mxu0 0.0
        %750 = vmatpush1.msra.mxu0 0.0
        %751 = vmatprep.subr.mxu0 0.0
        %752 = vmatpush1.msra.mxu0 0.0
        %753 = vmatprep.subr.mxu0 0.0
        %754 = vmatpush1.msra.mxu0 0.0
        %755 = vmatprep.subr.mxu0 0.0
        %756 = vmatpush1.msra.mxu0 0.0
        %757 = vmatprep.subr.mxu0 0.0
        %758 = vmatpush1.msra.mxu0 0.0
        %759 = vmatprep.subr.mxu0 0.0
        %760 = vmatpush1.msra.mxu0 0.0
        %761 = vmatprep.subr.mxu0 0.0
        %762 = vmatpush1.msra.mxu0 0.0
        %763 = vmatprep.subr.mxu0 0.0
        %764 = vmatpush1.msra.mxu0 0.0
        %765 = vmatprep.subr.mxu0 0.0
        %766 = vmatpush1.msra.mxu0 0.0
        %767 = vmatprep.mubr.f32.mxu0 0.0
        %768 = vmatmul.mubr.f32.gmra.mrb[0].mxu0 %v701
        %v769 = vpop.f32.mrb[0].mxu0
        %v770 = vadd.f32 %v698, %v769
        %v771 = vpop.f32.mrb[0].mxu0
        %772 = vdwg.mxu0
        %v773 = vxor.u32 %v770, 2147483648
        %v774 = vmul.f32 %v773, 1.442695
        %v775 = vpow.pop %v774
        %v776 = vadd.f32 %v775, 1.0
        %v777 = vrcp.pop %v776
        %v778 = vmul.f32 1.0, %v777
        %779 = vst [vmem:[%s285] sm:$0x1] %v778
        %s780 = sand.u32 %s183, 1
        %s781 = scalar_lea.sflag [#allocation4], %s780
        %s782 = sand.u32 %s183, 1
        %s783 = scalar_lea.vmem [#allocation3], %s782
        // Predicated region
        $region49: #{tpu_custom_call.1} parent=47 // pred_check
          %p784 = pneg %p193
        $region50: #{tpu_custom_call.1} parent=47 // pred_check_branch
          %786 = sbr.rel (%p784) target = $region52
        $region51: #{tpu_custom_call.1} parent=47 // pred_region
          %s788 = ssub.s32 16, 16
          %789 = vsyncadd %s781, %s788
          %s790 = smul.addr %s23, 16
          %s791 = scalar_lea.hbm %s7, %s790
          %s793 = sshll.u32 %s783, 4
          %s794 = int_to_ptr.vmem [resolvable:$true] %s793
          %796 = dma.vmem_to_hbm [thread:$0]  %s794, 16, %s791, %s781
        $region52: #{tpu_custom_call.1} parent=47 // pred_fallthru
          _
      $region48: #{tpu_custom_call.1} parent=5 // pred_fallthru
        _
      %p797 = scmp.le.s32.totalorder 2, %s18
      // Predicated region
      $region53: #{tpu_custom_call.1} parent=5 // pred_check
        %p798 = pneg %p797
      $region54: #{tpu_custom_call.1} parent=5 // pred_check_branch
        %800 = sbr.rel (%p798) target = $region56
      $region55: #{tpu_custom_call.1} parent=5 // pred_region
        %s801 = ssub.s32 %s18, 2
        // Predicated region
        $region57: #{tpu_custom_call.1} parent=55 // pred_check
          %p802 = pneg %p199
        $region58: #{tpu_custom_call.1} parent=55 // pred_check_branch
          %804 = sbr.rel (%p802) target = $region60
        $region59: #{tpu_custom_call.1} parent=55 // pred_region
          %s805 = sand.u32 %s184, 1
          %s806 = scalar_lea.sflag [#allocation4], %s805
          %s807 = sand.u32 %s184, 1
          %s808 = scalar_lea.vmem [#allocation3], %s807
          %809 = dma.done %s806, 16
        $region60: #{tpu_custom_call.1} parent=55 // pred_fallthru
          _
      $region56: #{tpu_custom_call.1} parent=5 // pred_fallthru
        _
    $region6: #{tpu_custom_call.1} parent=1 // loop_footer
      %s22 = sadd.s32 1, %s18
    $region7: #{tpu_custom_call.1} parent=1 // loop_footer_branch
      %17 = sbr.rel target = $region3
    $region8: #{tpu_custom_call.1} parent=1 // loop_exit
      _
    %810 = vsyncpa [#allocation4], 1
    %s811 = scalar_lea.sflag [#allocation4], 1
    %812 = vsyncpa %s811, 1

</llo_original>
